<compile_context>
chip_gen: v7x
topology: tpu7x:2x2x1
jax: 0.10.0
libtpu: 0.0.40
codegen_flags: <defaults>
</compile_context>

<pallas_src>
import jax
import jax.numpy as jnp
from jax.experimental import pallas as pl
from jax.experimental.pallas import tpu as pltpu

IN_DIM = 10      # nn.Linear(10, 10) input features
HID_DIM = 10     # hidden features
OUT_DIM = 5      # nn.Linear(10, 5) output features

IN_PAD = 16      # x padded to 16 lanes; lane index IN_DIM carries a constant 1
HID_PAD = 128    # hidden padded to 128 lanes (lane-dense layer-1 out / layer-2 in)
OUT_PAD = 128    # output padded to 128 lanes (unmasked stores); sliced to 5 outside


def _round_up(n, m):
    return (n + m - 1) // m * m


def toy_mlp_kernel(x_ref, w1_ref, w2_ref, o_ref):
    # Layer 1 (+bias, folded into w1): MXU matmul with f32 accumulation.
    h = jnp.dot(x_ref[...], w1_ref[...], preferred_element_type=jnp.float32)
    # ReLU (VPU). The constant-1 lane passes through unchanged (ReLU(1) == 1).
    h = jnp.maximum(h, 0.0)
    # Layer 2 (+bias, folded into w2).
    o_ref[...] = jnp.dot(h, w2_ref[...],
                         preferred_element_type=jnp.float32).astype(o_ref.dtype)


def pack_params(w1, b1, w2, b2, dtype=jnp.float32):
    """Fold biases into zero-padded weights (done once, outside the kernel).

    Layer 1: x_aug[:, IN_DIM] == 1, so row IN_DIM of W1p is b1.  W1p[IN_DIM,
    HID_DIM] = 1 carries the constant lane through ReLU so layer 2's bias can
    be folded the same way (row HID_DIM of W2p is b2).
    """
    w1p = jnp.zeros((IN_PAD, HID_PAD), dtype)
    w1p = w1p.at[:IN_DIM, :HID_DIM].set(w1.astype(dtype))
    w1p = w1p.at[IN_DIM, :HID_DIM].set(b1.reshape(-1).astype(dtype))
    w1p = w1p.at[IN_DIM, HID_DIM].set(1.0)          # pass-through constant lane

    w2p = jnp.zeros((HID_PAD, OUT_PAD), dtype)
    w2p = w2p.at[:HID_DIM, :OUT_DIM].set(w2.astype(dtype))
    w2p = w2p.at[HID_DIM, :OUT_DIM].set(b2.reshape(-1).astype(dtype))
    return w1p, w2p


def toy_model_forward(x, w1, b1, w2, b2, *, batch_tile=1024):
    B = x.shape[0]
    dtype = x.dtype
    w1p, w2p = pack_params(w1, b1, w2, b2, dtype=dtype)

    # Batch tile: multiple of 8 (sublane), capped at `batch_tile`; pad B up to
    # a tile multiple so the grid divides evenly.
    tb = min(batch_tile, _round_up(B, 8))
    b_pad = _round_up(B, tb)

    # Augment x with the constant-1 bias lane and zero-pad to (b_pad, IN_PAD).
    x_aug = jnp.zeros((b_pad, IN_PAD), dtype)
    x_aug = x_aug.at[:B, :IN_DIM].set(x)
    x_aug = x_aug.at[:B, IN_DIM].set(1.0)

    grid = (b_pad // tb,)
    flops = 2 * b_pad * IN_PAD * HID_PAD + 2 * b_pad * HID_PAD * OUT_PAD
    bytes_accessed = x_aug.nbytes + w1p.nbytes + w2p.nbytes + b_pad * OUT_PAD * 4

    out_padded = pl.pallas_call(
        toy_mlp_kernel,
        out_shape=jax.ShapeDtypeStruct((b_pad, OUT_PAD), dtype),
        grid_spec=pltpu.PrefetchScalarGridSpec(
            num_scalar_prefetch=0,
            grid=grid,
            in_specs=[
                # x streams over the batch axis (double-buffered by Pallas).
                pl.BlockSpec((tb, IN_PAD), lambda i: (i, 0)),
                # Weights: constant block index -> stay VMEM-resident.
                pl.BlockSpec((IN_PAD, HID_PAD), lambda i: (0, 0)),
                pl.BlockSpec((HID_PAD, OUT_PAD), lambda i: (0, 0)),
            ],
            out_specs=pl.BlockSpec((tb, OUT_PAD), lambda i: (i, 0)),
        ),
        compiler_params=pltpu.CompilerParams(
            # Shards the batch grid across both TensorCores on v7x; harmless
            # (single TC) on v5e/v6e.
            dimension_semantics=("parallel",),
        ),
        cost_estimate=pl.CostEstimate(
            flops=flops, transcendentals=0, bytes_accessed=bytes_accessed),
    )(x_aug, w1p, w2p)

    # Strip batch padding and the lane padding of the 5-wide output.
    return out_padded[:B, :OUT_DIM]


def init_linear_params(key, in_features, out_features, dtype=jnp.float32):
    # Mimic torch.nn.Linear default init: U(-1/sqrt(fan_in), 1/sqrt(fan_in)).
    k_w, k_b = jax.random.split(key)
    bound = 1.0 / jnp.sqrt(jnp.asarray(in_features, dtype))
    # Stored as (in_features, out_features) = W^T relative to PyTorch.
    w = jax.random.uniform(k_w, (in_features, out_features), dtype,
                           minval=-bound, maxval=bound)
    b = jax.random.uniform(k_b, (out_features,), dtype,
                           minval=-bound, maxval=bound)
    return w, b


if __name__ == "__main__":
    key = jax.random.PRNGKey(0)
    k_x, k_x2, k_l1, k_l2 = jax.random.split(key, 4)

    w1, b1 = init_linear_params(k_l1, IN_DIM, HID_DIM)
    w2, b2 = init_linear_params(k_l2, HID_DIM, OUT_DIM)

    def reference(x):
        return jnp.maximum(x @ w1 + b1, 0.0) @ w2 + b2

    # Small shape consistent with the module.
    batch = 8
    x = jax.random.normal(k_x, (batch, IN_DIM), dtype=jnp.float32)
    out = toy_model_forward(x, w1, b1, w2, b2)
    jax.block_until_ready(out)
    assert out.shape == (batch, OUT_DIM)
    assert jnp.allclose(out, reference(x), atol=1e-5, rtol=1e-5)

    # Second call exercises the batch-padding path (non-multiple-of-8 batch).
    x2 = jax.random.normal(k_x2, (100, IN_DIM), dtype=jnp.float32)
    out2 = toy_model_forward(x2, w1, b1, w2, b2)
    jax.block_until_ready(out2)
    assert out2.shape == (100, OUT_DIM)
    assert jnp.allclose(out2, reference(x2), atol=1e-5, rtol=1e-5)

    print("KERNEL_OK")
</pallas_src>

<mosaic_0001>
module attributes {stable_mosaic.version = 11 : i64} {
  func.func @toy_mlp_kernel(%arg0: i32, %arg1: memref<8x16xf32, #tpu.memory_space<vmem>>, %arg2: memref<16x128xf32, #tpu.memory_space<vmem>>, %arg3: memref<128x128xf32, #tpu.memory_space<vmem>>, %arg4: memref<8x128xf32, #tpu.memory_space<vmem>>) attributes {dimension_semantics = [#tpu.dimension_semantics<parallel>], iteration_bounds = array<i64: 1>, scalar_prefetch = 0 : i64, scratch_operands = 0 : i64, tpu.core_type = #tpu.core_type<tc>, window_params = [{transform_indices = @transform_0, window_bounds = array<i64: 8, 16>}, {pipeline_mode = #tpu.pipeline_mode<synchronous>, transform_indices = @transform_1, window_bounds = array<i64: 16, 128>}, {pipeline_mode = #tpu.pipeline_mode<synchronous>, transform_indices = @transform_2, window_bounds = array<i64: 128, 128>}, {transform_indices = @transform_3, window_bounds = array<i64: 8, 128>}]} {
    %c0 = arith.constant 0 : index
    %c0_0 = arith.constant 0 : index
    %0 = vector.load %arg1[%c0, %c0_0] : memref<8x16xf32, #tpu.memory_space<vmem>>, vector<8x16xf32>
    %c0_1 = arith.constant 0 : index
    %c0_2 = arith.constant 0 : index
    %1 = vector.load %arg2[%c0_1, %c0_2] : memref<16x128xf32, #tpu.memory_space<vmem>>, vector<16x128xf32>
    %cst = arith.constant dense<0.000000e+00> : vector<8x128xf32>
    %2 = tpu.matmul %0, %1, %cst {dimension_numbers = #tpu.dot_dimension_numbers<[1], [0], [0], [1], [0, 0, 1, 1], [], []>} : vector<8x16xf32>, vector<16x128xf32>, vector<8x128xf32> -> vector<8x128xf32>
    %cst_3 = arith.constant 0.000000e+00 : f32
    %3 = vector.broadcast %cst_3 : f32 to vector<8x128xf32>
    %4 = arith.maximumf %2, %3 : vector<8x128xf32>
    %c0_4 = arith.constant 0 : index
    %c0_5 = arith.constant 0 : index
    %5 = vector.load %arg3[%c0_4, %c0_5] : memref<128x128xf32, #tpu.memory_space<vmem>>, vector<128x128xf32>
    %cst_6 = arith.constant dense<0.000000e+00> : vector<8x128xf32>
    %6 = tpu.matmul %4, %5, %cst_6 {dimension_numbers = #tpu.dot_dimension_numbers<[1], [0], [0], [1], [0, 0, 1, 1], [], []>} : vector<8x128xf32>, vector<128x128xf32>, vector<8x128xf32> -> vector<8x128xf32>
    %c0_7 = arith.constant 0 : index
    %c0_8 = arith.constant 0 : index
    %7 = vector.load %arg4[%c0_7, %c0_8] : memref<8x128xf32, #tpu.memory_space<vmem>>, vector<8x128xf32>
    tpu.vector_store %arg4[%c0_7, %c0_8], %6 {strides = array<i32>} : memref<8x128xf32, #tpu.memory_space<vmem>>, vector<8x128xf32>,
    return
  }
  func.func @transform_0(%arg0: i32) -> (i32, i32) {
    %c0_i32 = arith.constant 0 : i32
    %c0_i32_0 = arith.constant 0 : i32
    return %arg0, %c0_i32 : i32, i32
  }
  func.func @transform_1(%arg0: i32) -> (i32, i32) {
    %c0_i32 = arith.constant 0 : i32
    %c0_i32_0 = arith.constant 0 : i32
    %c0_i32_1 = arith.constant 0 : i32
    return %c0_i32, %c0_i32_0 : i32, i32
  }
  func.func @transform_2(%arg0: i32) -> (i32, i32) {
    %c0_i32 = arith.constant 0 : i32
    %c0_i32_0 = arith.constant 0 : i32
    %c0_i32_1 = arith.constant 0 : i32
    return %c0_i32, %c0_i32_0 : i32, i32
  }
  func.func @transform_3(%arg0: i32) -> (i32, i32) {
    %c0_i32 = arith.constant 0 : i32
    %c0_i32_0 = arith.constant 0 : i32
    return %arg0, %c0_i32 : i32, i32
  }
}

</mosaic_0001>

<llo_original>
// kernel: tpu_custom_call.1
$region0: #{tpu_custom_call.1}
  #allocation0 [shape = 'u32[]', space=smem, size = 0x4, offset = 0x4, fixed_abs, tag = 'smem constant byte address 0x4 - core index']
  #allocation1 [shape = 'u32[144,128]{1,0:T(1,128)}', space=vmem, size = 0x12000, scoped, tag = 'internal scratch']
  %s0 = inlined_call_operand.hbm [shape: f32[8,16], index: 0, kind: input, shape index: {}]
  %s1 = inlined_call_operand.hbm [shape: f32[16,128], index: 1, kind: input, shape index: {}]
  %s2 = inlined_call_operand.hbm [shape: f32[128,128], index: 2, kind: input, shape index: {}]
  %s3 = inlined_call_operand.hbm [shape: f32[8,128], index: 3, kind: output, shape index: {}]
  %s4 = sld [smem:[#allocation0]]
  $region34: #{tpu_custom_call.1} parent=0
    _
  %s6 = ssub.s32 1, %s4
  %s7 = scalar_select 0, %s6, %s4
  $region1: #{tpu_custom_call.1} parent=0
    #allocation2 [shape = 'u8[4096]{0}', space=vmem, size = 0x1000, scoped, tag = 'input window, operand 0, single buffered']
    #allocation3 [shape = 's32[1]{0}', space=sflag, size = 0x4, scoped, tag = 'scoped memory for tpu_custom_call.1']
    #allocation4 [shape = 's32[1]{0}', space=sflag, size = 0x4, scoped, tag = 'scoped memory for tpu_custom_call.1']
    #allocation5 [shape = 'u8[8192]{0}', space=vmem, size = 0x2000, scoped, tag = 'input window, operand 1, single buffered']
    #allocation6 [shape = 's32[1]{0}', space=sflag, size = 0x4, scoped, tag = 'scoped memory for tpu_custom_call.1']
    #allocation7 [shape = 'u8[65536]{0}', space=vmem, size = 0x10000, scoped, tag = 'input window, operand 2, single buffered']
    #allocation8 [shape = 'u8[4096]{0}', space=vmem, size = 0x1000, scoped, tag = 'output window, operand 0, single buffered']
    %8 = vsyncpa [#allocation3], 0
    %9 = vsyncpa [#allocation6], 0
    %10 = vsyncpa [#allocation4], 0
    // Predicated region
    $region2: #{tpu_custom_call.1} parent=1 // pred_check
      _
    $region3: #{tpu_custom_call.1} parent=1 // pred_check_branch
      %12 = sbr.rel (0) target = $region5
    $region4: #{tpu_custom_call.1} parent=1 // pred_region
      %s14 = ssub.s32 128, 128
      %15 = vsyncadd [#allocation3], %s14
      %s17 = sshll.u32 [#allocation2], 4
      %s18 = int_to_ptr.vmem [resolvable:$true] %s17
      %20 = dma.hbm_to_vmem [thread:$0]  %s0, 128, %s18, [#allocation3]
    $region5: #{tpu_custom_call.1} parent=1 // pred_fallthru
      _
    // Predicated region
    $region6: #{tpu_custom_call.1} parent=1 // pred_check
      _
    $region7: #{tpu_custom_call.1} parent=1 // pred_check_branch
      %22 = sbr.rel (0) target = $region9
    $region8: #{tpu_custom_call.1} parent=1 // pred_region
      %s24 = ssub.s32 256, 256
      %25 = vsyncadd [#allocation6], %s24
      %s26 = sshll.u32 [#allocation5], 4
      %s27 = int_to_ptr.vmem [resolvable:$true] %s26
      %32 = dma.hbm_to_vmem [thread:$0]  %s1, 256, %s27, [#allocation6], 128, 128, 8
    $region9: #{tpu_custom_call.1} parent=1 // pred_fallthru
      _
    // Predicated region
    $region10: #{tpu_custom_call.1} parent=1 // pred_check
      _
    $region11: #{tpu_custom_call.1} parent=1 // pred_check_branch
      %34 = sbr.rel (0) target = $region13
    $region12: #{tpu_custom_call.1} parent=1 // pred_region
      %s36 = ssub.s32 2048, 2048
      %37 = vsyncadd [#allocation6], %s36
      %s38 = sshll.u32 [#allocation7], 4
      %s39 = int_to_ptr.vmem [resolvable:$true] %s38
      %44 = dma.hbm_to_vmem [thread:$0]  %s2, 2048, %s39, [#allocation6], 128, 128, 8
    $region13: #{tpu_custom_call.1} parent=1 // pred_fallthru
      _
    // Predicated region
    $region14: #{tpu_custom_call.1} parent=1 // pred_check
      _
    $region15: #{tpu_custom_call.1} parent=1 // pred_check_branch
      %46 = sbr.rel (0) target = $region17
    $region16: #{tpu_custom_call.1} parent=1 // pred_region
      %47 = dma.done [#allocation3], 128
    $region17: #{tpu_custom_call.1} parent=1 // pred_fallthru
      _
    // Predicated region
    $region18: #{tpu_custom_call.1} parent=1 // pred_check
      _
    $region19: #{tpu_custom_call.1} parent=1 // pred_check_branch
      %49 = sbr.rel (0) target = $region21
    $region20: #{tpu_custom_call.1} parent=1 // pred_region
      %50 = dma.done [#allocation6], 256
    $region21: #{tpu_custom_call.1} parent=1 // pred_fallthru
      _
    // Predicated region
    $region22: #{tpu_custom_call.1} parent=1 // pred_check
      _
    $region23: #{tpu_custom_call.1} parent=1 // pred_check_branch
      %52 = sbr.rel (0) target = $region25
    $region24: #{tpu_custom_call.1} parent=1 // pred_region
      %53 = dma.done [#allocation6], 2048
    $region25: #{tpu_custom_call.1} parent=1 // pred_fallthru
      _
    %v54 = vld [vmem:[#allocation2] sm:$0xff]
    %v55 = vld [vmem:[#allocation5] sm:$0xff]
    %v56 = vld [vmem:[#allocation5 + $0x8] sm:$0xff]
    %vm57 = vcmask 130048
    %v59 = vsel %vm57, %v54, 0
    %61 = vmatprep.subr.mxu0 0.0
    %62 = vmatpush1.msra.mxu0 %v55
    %63 = vmatprep.subr.mxu0 0.0
    %64 = vmatpush1.msra.mxu0 %v56
    %65 = vmatprep.subr.mxu0 0.0
    %66 = vmatpush1.msra.mxu0 0.0
    %67 = vmatprep.subr.mxu0 0.0
    %68 = vmatpush1.msra.mxu0 0.0
    %69 = vmatprep.subr.mxu0 0.0
    %70 = vmatpush1.msra.mxu0 0.0
    %71 = vmatprep.subr.mxu0 0.0
    %72 = vmatpush1.msra.mxu0 0.0
    %73 = vmatprep.subr.mxu0 0.0
    %74 = vmatpush1.msra.mxu0 0.0
    %75 = vmatprep.subr.mxu0 0.0
    %76 = vmatpush1.msra.mxu0 0.0
    %77 = vmatprep.subr.mxu0 0.0
    %78 = vmatpush1.msra.mxu0 0.0
    %79 = vmatprep.subr.mxu0 0.0
    %80 = vmatpush1.msra.mxu0 0.0
    %81 = vmatprep.subr.mxu0 0.0
    %82 = vmatpush1.msra.mxu0 0.0
    %83 = vmatprep.subr.mxu0 0.0
    %84 = vmatpush1.msra.mxu0 0.0
    %85 = vmatprep.subr.mxu0 0.0
    %86 = vmatpush1.msra.mxu0 0.0
    %87 = vmatprep.subr.mxu0 0.0
    %88 = vmatpush1.msra.mxu0 0.0
    %89 = vmatprep.subr.mxu0 0.0
    %90 = vmatpush1.msra.mxu0 0.0
    %91 = vmatprep.subr.mxu0 0.0
    %92 = vmatpush1.msra.mxu0 0.0
    %93 = vmatprep.subr.mxu0 0.0
    %94 = vmatpush1.msra.mxu0 0.0
    %95 = vmatprep.subr.mxu0 0.0
    %96 = vmatpush1.msra.mxu0 0.0
    %97 = vmatprep.subr.mxu0 0.0
    %98 = vmatpush1.msra.mxu0 0.0
    %99 = vmatprep.subr.mxu0 0.0
    %100 = vmatpush1.msra.mxu0 0.0
    %101 = vmatprep.subr.mxu0 0.0
    %102 = vmatpush1.msra.mxu0 0.0
    %103 = vmatprep.subr.mxu0 0.0
    %104 = vmatpush1.msra.mxu0 0.0
    %105 = vmatprep.subr.mxu0 0.0
    %106 = vmatpush1.msra.mxu0 0.0
    %107 = vmatprep.subr.mxu0 0.0
    %108 = vmatpush1.msra.mxu0 0.0
    %109 = vmatprep.subr.mxu0 0.0
    %110 = vmatpush1.msra.mxu0 0.0
    %111 = vmatprep.subr.mxu0 0.0
    %112 = vmatpush1.msra.mxu0 0.0
    %113 = vmatprep.subr.mxu0 0.0
    %114 = vmatpush1.msra.mxu0 0.0
    %115 = vmatprep.subr.mxu0 0.0
    %116 = vmatpush1.msra.mxu0 0.0
    %117 = vmatprep.subr.mxu0 0.0
    %118 = vmatpush1.msra.mxu0 0.0
    %119 = vmatprep.subr.mxu0 0.0
    %120 = vmatpush1.msra.mxu0 0.0
    %121 = vmatprep.subr.mxu0 0.0
    %122 = vmatpush1.msra.mxu0 0.0
    %123 = vmatprep.subr.mxu0 0.0
    %124 = vmatpush1.msra.mxu0 0.0
    %125 = vmatprep.mubr.f32.mxu0 0.0
    %126 = vmatmul.mubr.f32.gmra.mrb[0].mxu0 %v59
    %v127 = vpop.f32.mrb[0].mxu0
    %v128 = vadd.f32 0.0, %v127
    %v129 = vpop.f32.mrb[0].mxu0
    %130 = vdwg.mxu0
    %v131 = vmax.f32 %v128, 0.0
    %v132 = vld [vmem:[#allocation7] sm:$0xff]
    %v133 = vld [vmem:[#allocation7 + $0x8] sm:$0xff]
    %v134 = vld [vmem:[#allocation7 + $0x10] sm:$0xff]
    %v135 = vld [vmem:[#allocation7 + $0x18] sm:$0xff]
    %v136 = vld [vmem:[#allocation7 + $0x20] sm:$0xff]
    %v137 = vld [vmem:[#allocation7 + $0x28] sm:$0xff]
    %v138 = vld [vmem:[#allocation7 + $0x30] sm:$0xff]
    %v139 = vld [vmem:[#allocation7 + $0x38] sm:$0xff]
    %v140 = vld [vmem:[#allocation7 + $0x40] sm:$0xff]
    %v141 = vld [vmem:[#allocation7 + $0x48] sm:$0xff]
    %v142 = vld [vmem:[#allocation7 + $0x50] sm:$0xff]
    %v143 = vld [vmem:[#allocation7 + $0x58] sm:$0xff]
    %v144 = vld [vmem:[#allocation7 + $0x60] sm:$0xff]
    %v145 = vld [vmem:[#allocation7 + $0x68] sm:$0xff]
    %v146 = vld [vmem:[#allocation7 + $0x70] sm:$0xff]
    %v147 = vld [vmem:[#allocation7 + $0x78] sm:$0xff]
    %148 = vmatprep.subr.mxu0 0.0
    %149 = vmatpush1.msra.mxu0 %v132
    %150 = vmatprep.subr.mxu0 0.0
    %151 = vmatpush1.msra.mxu0 %v133
    %152 = vmatprep.subr.mxu0 0.0
    %153 = vmatpush1.msra.mxu0 %v134
    %154 = vmatprep.subr.mxu0 0.0
    %155 = vmatpush1.msra.mxu0 %v135
    %156 = vmatprep.subr.mxu0 0.0
    %157 = vmatpush1.msra.mxu0 %v136
    %158 = vmatprep.subr.mxu0 0.0
    %159 = vmatpush1.msra.mxu0 %v137
    %160 = vmatprep.subr.mxu0 0.0
    %161 = vmatpush1.msra.mxu0 %v138
    %162 = vmatprep.subr.mxu0 0.0
    %163 = vmatpush1.msra.mxu0 %v139
    %164 = vmatprep.subr.mxu0 0.0
    %165 = vmatpush1.msra.mxu0 %v140
    %166 = vmatprep.subr.mxu0 0.0
    %167 = vmatpush1.msra.mxu0 %v141
    %168 = vmatprep.subr.mxu0 0.0
    %169 = vmatpush1.msra.mxu0 %v142
    %170 = vmatprep.subr.mxu0 0.0
    %171 = vmatpush1.msra.mxu0 %v143
    %172 = vmatprep.subr.mxu0 0.0
    %173 = vmatpush1.msra.mxu0 %v144
    %174 = vmatprep.subr.mxu0 0.0
    %175 = vmatpush1.msra.mxu0 %v145
    %176 = vmatprep.subr.mxu0 0.0
    %177 = vmatpush1.msra.mxu0 %v146
    %178 = vmatprep.subr.mxu0 0.0
    %179 = vmatpush1.msra.mxu0 %v147
    %180 = vmatprep.subr.mxu0 0.0
    %181 = vmatpush1.msra.mxu0 0.0
    %182 = vmatprep.subr.mxu0 0.0
    %183 = vmatpush1.msra.mxu0 0.0
    %184 = vmatprep.subr.mxu0 0.0
    %185 = vmatpush1.msra.mxu0 0.0
    %186 = vmatprep.subr.mxu0 0.0
    %187 = vmatpush1.msra.mxu0 0.0
    %188 = vmatprep.subr.mxu0 0.0
    %189 = vmatpush1.msra.mxu0 0.0
    %190 = vmatprep.subr.mxu0 0.0
    %191 = vmatpush1.msra.mxu0 0.0
    %192 = vmatprep.subr.mxu0 0.0
    %193 = vmatpush1.msra.mxu0 0.0
    %194 = vmatprep.subr.mxu0 0.0
    %195 = vmatpush1.msra.mxu0 0.0
    %196 = vmatprep.subr.mxu0 0.0
    %197 = vmatpush1.msra.mxu0 0.0
    %198 = vmatprep.subr.mxu0 0.0
    %199 = vmatpush1.msra.mxu0 0.0
    %200 = vmatprep.subr.mxu0 0.0
    %201 = vmatpush1.msra.mxu0 0.0
    %202 = vmatprep.subr.mxu0 0.0
    %203 = vmatpush1.msra.mxu0 0.0
    %204 = vmatprep.subr.mxu0 0.0
    %205 = vmatpush1.msra.mxu0 0.0
    %206 = vmatprep.subr.mxu0 0.0
    %207 = vmatpush1.msra.mxu0 0.0
    %208 = vmatprep.subr.mxu0 0.0
    %209 = vmatpush1.msra.mxu0 0.0
    %210 = vmatprep.subr.mxu0 0.0
    %211 = vmatpush1.msra.mxu0 0.0
    %212 = vmatprep.mubr.f32.mxu0 0.0
    %213 = vmatmul.mubr.f32.gmra.mrb[0].mxu0 %v131
    %v214 = vpop.f32.mrb[0].mxu0
    %v215 = vadd.f32 0.0, %v214
    %v216 = vpop.f32.mrb[0].mxu0
    %217 = vdwg.mxu0
    %218 = vst [vmem:[#allocation8] sm:$0xff] %v215
    // Predicated region
    $region26: #{tpu_custom_call.1} parent=1 // pred_check
      _
    $region27: #{tpu_custom_call.1} parent=1 // pred_check_branch
      %220 = sbr.rel (0) target = $region29
    $region28: #{tpu_custom_call.1} parent=1 // pred_region
      %s222 = ssub.s32 128, 128
      %223 = vsyncadd [#allocation4], %s222
      %s225 = sshll.u32 [#allocation8], 4
      %s226 = int_to_ptr.vmem [resolvable:$true] %s225
      %228 = dma.vmem_to_hbm [thread:$0]  %s226, 128, %s3, [#allocation4]
    $region29: #{tpu_custom_call.1} parent=1 // pred_fallthru
      _
    // Predicated region
    $region30: #{tpu_custom_call.1} parent=1 // pred_check
      _
    $region31: #{tpu_custom_call.1} parent=1 // pred_check_branch
      %230 = sbr.rel (0) target = $region33
    $region32: #{tpu_custom_call.1} parent=1 // pred_region
      %231 = dma.done [#allocation4], 128
    $region33: #{tpu_custom_call.1} parent=1 // pred_fallthru
      _
    %232 = vsyncpa [#allocation3], 1
    %233 = vsyncpa [#allocation6], 1
    %234 = vsyncpa [#allocation4], 1

</llo_original>
